<compile_context>
chip_gen: v7x
topology: tpu7x:2x2x1
jax: 0.10.0
libtpu: 0.0.40
codegen_flags: <defaults>
</compile_context>

<pallas_src>
import jax
import jax.numpy as jnp
from jax.experimental import pallas as pl
from jax.experimental.pallas import tpu as pltpu


def _round_up(a, m):
    return ((a + m - 1) // m) * m


def rbf_kernel(x_ref, maug_ref, w_ref, b_ref, o_ref, xa_ref, acc_ref):
    # x_ref:    (tile_b, Dp)    f32   batch tile (zero padded features)
    # maug_ref: (Da, tile_c)    f32   [M ; 0 ; g ; k0 ; 0]   (Da = Dp + 8)
    # w_ref:    (tile_c, Np)    bf16  linear weight tile (transposed, padded)
    # b_ref:    (1, Np)         f32   bias (padded)
    # o_ref:    (tile_b, Np)    f32   output tile
    # xa_ref:   (tile_b, Da)    f32   scratch: augmented x = [x, ||x||^2, 1, 0]
    # acc_ref:  (tile_b, Np)    f32   scratch: linear-layer accumulator
    k = pl.program_id(1)
    dp = x_ref.shape[1]

    @pl.when(k == 0)
    def _():
        # (Re)build the augmented batch tile once per batch step; padding
        # columns must be zero so the matmul is exact.  Also zero the
        # accumulator for the center-dim reduction.
        x = x_ref[...]
        r = jnp.sum(x * x, axis=1, keepdims=True)            # ||x||^2 (XLU)
        xa_ref[...] = jnp.zeros_like(xa_ref)
        xa_ref[:, :dp] = x
        xa_ref[:, dp:dp + 1] = r
        xa_ref[:, dp + 1:dp + 2] = jnp.ones_like(r)
        acc_ref[...] = jnp.zeros_like(acc_ref)

    # -dist^2/(2 sigma^2) = x@M + ||x||^2 * g + k0, folded into one f32 matmul.
    z = jnp.dot(xa_ref[...], maug_ref[...], preferred_element_type=jnp.float32)
    z = jnp.minimum(z, 0.0)        # exponent is mathematically <= 0
    act = jnp.exp(z)               # EUP is the intended critical-path unit

    # Linear layer: bf16 MXU operands, f32 accumulation.
    acc_ref[...] += jnp.dot(act.astype(jnp.bfloat16), w_ref[...],
                            preferred_element_type=jnp.float32)

    @pl.when(k == pl.num_programs(1) - 1)
    def _():
        o_ref[...] = acc_ref[...] + b_ref[...]


def rbf_net_forward(x, centers, sigma, weight, bias, *, tile_b=None, tile_c=None):
    """RBFNet forward.

    x: (B, D); centers: (C, D); sigma: (1, C) or (C,); weight: (num_out, C);
    bias: (num_out,).  Returns (B, num_out) float32.
    """
    x = x.astype(jnp.float32)
    centers = centers.astype(jnp.float32)
    sigma = sigma.astype(jnp.float32).reshape(1, -1)
    weight = weight.astype(jnp.float32)
    bias = bias.astype(jnp.float32)

    B, D = x.shape
    C = centers.shape[0]
    num_out = weight.shape[0]

    # ---- padded / tiled sizes -------------------------------------------
    Dp = _round_up(D, 8)             # feature dim (sublane aligned)
    Da = Dp + 8                      # augmented features: [x | ||x||^2 | 1 | 0]
    Cp = _round_up(C, 128)           # center dim (lane aligned)
    Np = _round_up(num_out, 128)     # output dim (lane-dense stores)

    if tile_c is None:
        tile_c = min(Cp, 1024)       # stream centers when C is large (v7x VMEM)
    tile_c = min(Cp, _round_up(tile_c, 128))
    Cp = _round_up(Cp, tile_c)
    nk = Cp // tile_c

    if tile_b is None:
        tile_b = 512
    tile_b = max(8, min(_round_up(tile_b, 8), _round_up(B, 8)))
    Bp = _round_up(B, tile_b)
    # Prefer >= 2 batch steps so the "parallel" axis can shard across v7x's
    # two TensorCores (negligible cost on single-TC v5e/v6e).
    if Bp // tile_b < 2 and tile_b >= 16:
        tile_b = _round_up(tile_b // 2, 8)
        Bp = _round_up(B, tile_b)
    nb = Bp // tile_b

    # ---- grid-invariant parameter math, hoisted out of the kernel --------
    inv2s2 = 0.5 / (sigma * sigma)                                   # 1/(2s^2), (1, C)
    m = 2.0 * centers.T * inv2s2                                     # (D, C)
    g = -inv2s2                                                      # (1, C)
    k0 = -inv2s2 * jnp.sum(centers * centers, axis=1)[None, :]       # (1, C)

    maug = jnp.zeros((Da, Cp), jnp.float32)
    maug = maug.at[:D, :C].set(m)
    maug = maug.at[Dp, :C].set(g[0])
    maug = maug.at[Dp + 1, :C].set(k0[0])
    w_p = jnp.zeros((Cp, Np), jnp.bfloat16).at[:C, :num_out].set(
        weight.T.astype(jnp.bfloat16))
    b_p = jnp.zeros((1, Np), jnp.float32).at[:, :num_out].set(bias[None, :])
    x_p = jnp.zeros((Bp, Dp), jnp.float32).at[:B, :D].set(x)

    # ---- VMEM budget: ~80% of the chip's physical VMEM as the hard cap ----
    est = (
        4 * 2 * tile_b * Dp              # x tile (double buffered)
        + 4 * 2 * Da * tile_c            # M_aug tile
        + 2 * 2 * tile_c * Np            # W tile (bf16)
        + 4 * 2 * Np                     # bias
        + 4 * 2 * tile_b * Np            # out tile (double buffered)
        + 4 * tile_b * Da                # x_aug scratch
        + 4 * tile_b * Np                # accumulator scratch
        + 4 * 3 * tile_b * tile_c        # z / act intermediates
    )
    try:
        vmem_phys = pltpu.get_tpu_info().vmem_capacity_bytes
    except Exception:
        vmem_phys = 64 * 1024 * 1024     # conservative default (v7x per-core)
    vmem_cap = int(0.8 * vmem_phys)      # headroom for Mosaic internal scratch
    vmem_limit = int(min(vmem_cap, max(32 * 1024 * 1024, 2 * est)))

    grid = (nb, nk)

    def build(single_buffer_consts):
        const_kw = dict(pipeline_mode=pl.Buffered(1)) if single_buffer_consts else {}
        # Only truly grid-invariant tiles get single-buffered; M_aug / W are
        # invariant only when the whole center dim fits in one tile.
        res_kw = const_kw if nk == 1 else {}
        return pl.pallas_call(
            rbf_kernel,
            out_shape=jax.ShapeDtypeStruct((Bp, Np), jnp.float32),
            grid_spec=pltpu.PrefetchScalarGridSpec(
                num_scalar_prefetch=0,
                grid=grid,
                in_specs=[
                    pl.BlockSpec((tile_b, Dp), lambda i, k: (i, 0)),          # x
                    pl.BlockSpec((Da, tile_c), lambda i, k: (0, k), **res_kw),  # M_aug
                    pl.BlockSpec((tile_c, Np), lambda i, k: (k, 0), **res_kw),  # W^T
                    pl.BlockSpec((1, Np), lambda i, k: (0, 0), **const_kw),     # bias
                ],
                out_specs=pl.BlockSpec((tile_b, Np), lambda i, k: (i, 0)),
                scratch_shapes=[
                    pltpu.VMEM((tile_b, Da), jnp.float32),   # x_aug staging
                    pltpu.VMEM((tile_b, Np), jnp.float32),   # f32 accumulator
                ],
            ),
            compiler_params=pltpu.CompilerParams(
                dimension_semantics=("parallel", "arbitrary"),
                vmem_limit_bytes=vmem_limit,
            ),
        )

    try:
        out_p = build(True)(x_p, maug, w_p, b_p)
    except Exception:
        # pipeline_mode=pl.Buffered(1) is a VMEM-only optimization; fall back
        # to default double-buffering if this jax/Mosaic build rejects it.
        out_p = build(False)(x_p, maug, w_p, b_p)

    return out_p[:B, :num_out]


def rbf_net_reference(x, centers, sigma, weight, bias):
    # Direct transcription of the PyTorch forward (pure JAX), for checking.
    diff = x[:, None, :] - centers[None, :, :]
    z = jnp.exp(-((diff ** 2).sum(2)) / (2.0 * sigma ** 2))
    return z @ weight.T + bias


if __name__ == "__main__":
    # Small deterministic problem matching the module: B=8 samples, D=4 input
    # features, C=16 RBF centers, num_out=3 outputs; sigma has shape (1, C).
    B, D, C, num_out = 8, 4, 16, 3
    key = jax.random.PRNGKey(0)
    kx, kc, ks, kw, kb = jax.random.split(key, 5)

    x = jax.random.normal(kx, (B, D), dtype=jnp.float32)
    centers = jax.random.normal(kc, (C, D), dtype=jnp.float32)
    sigma = 0.5 + jax.random.uniform(ks, (1, C), dtype=jnp.float32)     # keep > 0
    weight = jax.random.normal(kw, (num_out, C), dtype=jnp.float32) / jnp.sqrt(C)
    bias = jax.random.normal(kb, (num_out,), dtype=jnp.float32) / jnp.sqrt(C)

    out = rbf_net_forward(x, centers, sigma, weight, bias)
    out = jax.block_until_ready(out)

    ref = rbf_net_reference(x, centers, sigma, weight, bias)
    assert out.shape == (B, num_out)
    # Tolerance accounts for bf16 operands in the act @ W^T matmul (f32 accum).
    assert jnp.allclose(out, ref, atol=2e-2, rtol=2e-2), "mismatch vs reference"

    print("KERNEL_OK")
</pallas_src>

<mosaic_0001>
module attributes {stable_mosaic.version = 11 : i64} {
  func.func @rbf_kernel(%arg0: i32, %arg1: i32, %arg2: memref<8x8xf32, #tpu.memory_space<vmem>>, %arg3: memref<16x128xf32, #tpu.memory_space<vmem>>, %arg4: memref<128x128xbf16, #tpu.memory_space<vmem>>, %arg5: memref<1x128xf32, #tpu.memory_space<vmem>>, %arg6: memref<8x128xf32, #tpu.memory_space<vmem>>, %arg7: memref<8x16xf32, #tpu.memory_space<vmem>>, %arg8: memref<8x128xf32, #tpu.memory_space<vmem>>) attributes {dimension_semantics = [#tpu.dimension_semantics<parallel>, #tpu.dimension_semantics<arbitrary>], iteration_bounds = array<i64: 1, 1>, scalar_prefetch = 0 : i64, scratch_operands = 2 : i64, tpu.core_type = #tpu.core_type<tc>, window_params = [{transform_indices = @transform_0, window_bounds = array<i64: 8, 8>}, {pipeline_mode = #tpu.pipeline_mode<synchronous>, transform_indices = @transform_1, window_bounds = array<i64: 16, 128>}, {pipeline_mode = #tpu.pipeline_mode<synchronous>, transform_indices = @transform_2, window_bounds = array<i64: 128, 128>}, {pipeline_mode = #tpu.pipeline_mode<synchronous>, transform_indices = @transform_3, window_bounds = array<i64: 1, 128>}, {transform_indices = @transform_4, window_bounds = array<i64: 8, 128>}]} {
    %c0_i32 = arith.constant 0 : i32
    %0 = arith.cmpi eq, %arg1, %c0_i32 : i32
    %1 = arith.extui %0 : i1 to i32
    %c0_i32_0 = arith.constant 0 : i32
    %2 = arith.cmpi ne, %1, %c0_i32_0 : i32
    scf.if %2 {
      %c0_14 = arith.constant 0 : index
      %c0_15 = arith.constant 0 : index
      %18 = vector.load %arg2[%c0_14, %c0_15] : memref<8x8xf32, #tpu.memory_space<vmem>>, vector<8x8xf32>
      %19 = arith.mulf %18, %18 : vector<8x8xf32>
      %cst_16 = arith.constant dense<0.000000e+00> : vector<8xf32>
      %20 = vector.multi_reduction <add>, %19, %cst_16 [1] : vector<8x8xf32> to vector<8xf32>
      %21 = vector.shape_cast %20 : vector<8xf32> to vector<8x1xf32>
      %cst_17 = arith.constant 0.000000e+00 : f32
      %22 = vector.broadcast %cst_17 : f32 to vector<8x16xf32>
      %c0_18 = arith.constant 0 : index
      %c0_19 = arith.constant 0 : index
      %23 = vector.load %arg7[%c0_18, %c0_19] : memref<8x16xf32, #tpu.memory_space<vmem>>, vector<8x16xf32>
      tpu.vector_store %arg7[%c0_18, %c0_19], %22 {strides = array<i32>} : memref<8x16xf32, #tpu.memory_space<vmem>>, vector<8x16xf32>,
      %c0_20 = arith.constant 0 : index
      %c0_21 = arith.constant 0 : index
      %24 = vector.load %arg7[%c0_20, %c0_21] : memref<8x16xf32, #tpu.memory_space<vmem>>, vector<8x8xf32>
      tpu.vector_store %arg7[%c0_20, %c0_21], %18 {strides = array<i32>} : memref<8x16xf32, #tpu.memory_space<vmem>>, vector<8x8xf32>,
      %c0_22 = arith.constant 0 : index
      %c8 = arith.constant 8 : index
      %25 = vector.load %arg7[%c0_22, %c8] : memref<8x16xf32, #tpu.memory_space<vmem>>, vector<8x1xf32>
      tpu.vector_store %arg7[%c0_22, %c8], %21 {strides = array<i32>} : memref<8x16xf32, #tpu.memory_space<vmem>>, vector<8x1xf32>,
      %cst_23 = arith.constant 1.000000e+00 : f32
      %26 = vector.broadcast %cst_23 : f32 to vector<8x1xf32>
      %c0_24 = arith.constant 0 : index
      %c9 = arith.constant 9 : index
      %27 = vector.load %arg7[%c0_24, %c9] : memref<8x16xf32, #tpu.memory_space<vmem>>, vector<8x1xf32>
      tpu.vector_store %arg7[%c0_24, %c9], %26 {strides = array<i32>} : memref<8x16xf32, #tpu.memory_space<vmem>>, vector<8x1xf32>,
      %cst_25 = arith.constant 0.000000e+00 : f32
      %28 = vector.broadcast %cst_25 : f32 to vector<8x128xf32>
      %c0_26 = arith.constant 0 : index
      %c0_27 = arith.constant 0 : index
      %29 = vector.load %arg8[%c0_26, %c0_27] : memref<8x128xf32, #tpu.memory_space<vmem>>, vector<8x128xf32>
      tpu.vector_store %arg8[%c0_26, %c0_27], %28 {strides = array<i32>} : memref<8x128xf32, #tpu.memory_space<vmem>>, vector<8x128xf32>,
    } else {
    }
    %c0 = arith.constant 0 : index
    %c0_1 = arith.constant 0 : index
    %3 = vector.load %arg7[%c0, %c0_1] : memref<8x16xf32, #tpu.memory_space<vmem>>, vector<8x16xf32>
    %c0_2 = arith.constant 0 : index
    %c0_3 = arith.constant 0 : index
    %4 = vector.load %arg3[%c0_2, %c0_3] : memref<16x128xf32, #tpu.memory_space<vmem>>, vector<16x128xf32>
    %cst = arith.constant dense<0.000000e+00> : vector<8x128xf32>
    %5 = tpu.matmul %3, %4, %cst {dimension_numbers = #tpu.dot_dimension_numbers<[1], [0], [0], [1], [0, 0, 1, 1], [], []>} : vector<8x16xf32>, vector<16x128xf32>, vector<8x128xf32> -> vector<8x128xf32>
    %cst_4 = arith.constant 0.000000e+00 : f32
    %6 = vector.broadcast %cst_4 : f32 to vector<8x128xf32>
    %7 = arith.minimumf %5, %6 : vector<8x128xf32>
    %8 = math.exp %7 : vector<8x128xf32>
    %c0_5 = arith.constant 0 : index
    %c0_6 = arith.constant 0 : index
    %9 = vector.load %arg8[%c0_5, %c0_6] : memref<8x128xf32, #tpu.memory_space<vmem>>, vector<8x128xf32>
    %10 = arith.truncf %8 : vector<8x128xf32> to vector<8x128xbf16>
    %c0_7 = arith.constant 0 : index
    %c0_8 = arith.constant 0 : index
    %11 = vector.load %arg4[%c0_7, %c0_8] : memref<128x128xbf16, #tpu.memory_space<vmem>>, vector<128x128xbf16>
    %cst_9 = arith.constant dense<0.000000e+00> : vector<8x128xf32>
    %12 = tpu.matmul %10, %11, %cst_9 {dimension_numbers = #tpu.dot_dimension_numbers<[1], [0], [0], [1], [0, 0, 1, 1], [], []>} : vector<8x128xbf16>, vector<128x128xbf16>, vector<8x128xf32> -> vector<8x128xf32>
    %13 = arith.addf %9, %12 : vector<8x128xf32>
    %c0_10 = arith.constant 0 : index
    %c0_11 = arith.constant 0 : index
    %14 = vector.load %arg8[%c0_10, %c0_11] : memref<8x128xf32, #tpu.memory_space<vmem>>, vector<8x128xf32>
    tpu.vector_store %arg8[%c0_10, %c0_11], %13 {strides = array<i32>} : memref<8x128xf32, #tpu.memory_space<vmem>>, vector<8x128xf32>,
    %c0_i32_12 = arith.constant 0 : i32
    %15 = arith.cmpi eq, %arg1, %c0_i32_12 : i32
    %16 = arith.extui %15 : i1 to i32
    %c0_i32_13 = arith.constant 0 : i32
    %17 = arith.cmpi ne, %16, %c0_i32_13 : i32
    scf.if %17 {
      %c0_14 = arith.constant 0 : index
      %c0_15 = arith.constant 0 : index
      %18 = vector.load %arg8[%c0_14, %c0_15] : memref<8x128xf32, #tpu.memory_space<vmem>>, vector<8x128xf32>
      %c0_16 = arith.constant 0 : index
      %c0_17 = arith.constant 0 : index
      %19 = vector.load %arg5[%c0_16, %c0_17] : memref<1x128xf32, #tpu.memory_space<vmem>>, vector<1x128xf32>
      %20 = vector.broadcast %19 : vector<1x128xf32> to vector<8x128xf32>
      %21 = arith.addf %18, %20 : vector<8x128xf32>
      %c0_18 = arith.constant 0 : index
      %c0_19 = arith.constant 0 : index
      %22 = vector.load %arg6[%c0_18, %c0_19] : memref<8x128xf32, #tpu.memory_space<vmem>>, vector<8x128xf32>
      tpu.vector_store %arg6[%c0_18, %c0_19], %21 {strides = array<i32>} : memref<8x128xf32, #tpu.memory_space<vmem>>, vector<8x128xf32>,
    } else {
    }
    return
  }
  func.func @transform_0(%arg0: i32, %arg1: i32) -> (i32, i32) {
    %c0_i32 = arith.constant 0 : i32
    %c0_i32_0 = arith.constant 0 : i32
    return %arg0, %c0_i32 : i32, i32
  }
  func.func @transform_1(%arg0: i32, %arg1: i32) -> (i32, i32) {
    %c0_i32 = arith.constant 0 : i32
    %c0_i32_0 = arith.constant 0 : i32
    return %c0_i32, %arg1 : i32, i32
  }
  func.func @transform_2(%arg0: i32, %arg1: i32) -> (i32, i32) {
    %c0_i32 = arith.constant 0 : i32
    %c0_i32_0 = arith.constant 0 : i32
    return %arg1, %c0_i32 : i32, i32
  }
  func.func @transform_3(%arg0: i32, %arg1: i32) -> (i32, i32) {
    %c0_i32 = arith.constant 0 : i32
    %c0_i32_0 = arith.constant 0 : i32
    %c0_i32_1 = arith.constant 0 : i32
    return %c0_i32, %c0_i32_0 : i32, i32
  }
  func.func @transform_4(%arg0: i32, %arg1: i32) -> (i32, i32) {
    %c0_i32 = arith.constant 0 : i32
    %c0_i32_0 = arith.constant 0 : i32
    return %arg0, %c0_i32 : i32, i32
  }
}

module attributes {stable_mosaic.version = 11 : i64} {
  func.func @rbf_kernel(%arg0: i32, %arg1: i32, %arg2: memref<8x8xf32, #tpu.memory_space<vmem>>, %arg3: memref<16x128xf32, #tpu.memory_space<vmem>>, %arg4: memref<128x128xbf16, #tpu.memory_space<vmem>>, %arg5: memref<1x128xf32, #tpu.memory_space<vmem>>, %arg6: memref<8x128xf32, #tpu.memory_space<vmem>>, %arg7: memref<8x16xf32, #tpu.memory_space<vmem>>, %arg8: memref<8x128xf32, #tpu.memory_space<vmem>>) attributes {dimension_semantics = [#tpu.dimension_semantics<parallel>, #tpu.dimension_semantics<arbitrary>], iteration_bounds = array<i64: 1, 1>, scalar_prefetch = 0 : i64, scratch_operands = 2 : i64, tpu.core_type = #tpu.core_type<tc>, window_params = [{transform_indices = @transform_0, window_bounds = array<i64: 8, 8>}, {transform_indices = @transform_1, window_bounds = array<i64: 16, 128>}, {transform_indices = @transform_2, window_bounds = array<i64: 128, 128>}, {pipeline_mode = #tpu.pipeline_mode<synchronous>, transform_indices = @transform_3, window_bounds = array<i64: 1, 128>}, {transform_indices = @transform_4, window_bounds = array<i64: 8, 128>}]} {
    %c0_i32 = arith.constant 0 : i32
    %0 = arith.cmpi eq, %arg1, %c0_i32 : i32
    %1 = arith.extui %0 : i1 to i32
    %c0_i32_0 = arith.constant 0 : i32
    %2 = arith.cmpi ne, %1, %c0_i32_0 : i32
    scf.if %2 {
      %c0_14 = arith.constant 0 : index
      %c0_15 = arith.constant 0 : index
      %18 = vector.load %arg2[%c0_14, %c0_15] : memref<8x8xf32, #tpu.memory_space<vmem>>, vector<8x8xf32>
      %19 = arith.mulf %18, %18 : vector<8x8xf32>
      %cst_16 = arith.constant dense<0.000000e+00> : vector<8xf32>
      %20 = vector.multi_reduction <add>, %19, %cst_16 [1] : vector<8x8xf32> to vector<8xf32>
      %21 = vector.shape_cast %20 : vector<8xf32> to vector<8x1xf32>
      %cst_17 = arith.constant 0.000000e+00 : f32
      %22 = vector.broadcast %cst_17 : f32 to vector<8x16xf32>
      %c0_18 = arith.constant 0 : index
      %c0_19 = arith.constant 0 : index
      %23 = vector.load %arg7[%c0_18, %c0_19] : memref<8x16xf32, #tpu.memory_space<vmem>>, vector<8x16xf32>
      tpu.vector_store %arg7[%c0_18, %c0_19], %22 {strides = array<i32>} : memref<8x16xf32, #tpu.memory_space<vmem>>, vector<8x16xf32>,
      %c0_20 = arith.constant 0 : index
      %c0_21 = arith.constant 0 : index
      %24 = vector.load %arg7[%c0_20, %c0_21] : memref<8x16xf32, #tpu.memory_space<vmem>>, vector<8x8xf32>
      tpu.vector_store %arg7[%c0_20, %c0_21], %18 {strides = array<i32>} : memref<8x16xf32, #tpu.memory_space<vmem>>, vector<8x8xf32>,
      %c0_22 = arith.constant 0 : index
      %c8 = arith.constant 8 : index
      %25 = vector.load %arg7[%c0_22, %c8] : memref<8x16xf32, #tpu.memory_space<vmem>>, vector<8x1xf32>
      tpu.vector_store %arg7[%c0_22, %c8], %21 {strides = array<i32>} : memref<8x16xf32, #tpu.memory_space<vmem>>, vector<8x1xf32>,
      %cst_23 = arith.constant 1.000000e+00 : f32
      %26 = vector.broadcast %cst_23 : f32 to vector<8x1xf32>
      %c0_24 = arith.constant 0 : index
      %c9 = arith.constant 9 : index
      %27 = vector.load %arg7[%c0_24, %c9] : memref<8x16xf32, #tpu.memory_space<vmem>>, vector<8x1xf32>
      tpu.vector_store %arg7[%c0_24, %c9], %26 {strides = array<i32>} : memref<8x16xf32, #tpu.memory_space<vmem>>, vector<8x1xf32>,
      %cst_25 = arith.constant 0.000000e+00 : f32
      %28 = vector.broadcast %cst_25 : f32 to vector<8x128xf32>
      %c0_26 = arith.constant 0 : index
      %c0_27 = arith.constant 0 : index
      %29 = vector.load %arg8[%c0_26, %c0_27] : memref<8x128xf32, #tpu.memory_space<vmem>>, vector<8x128xf32>
      tpu.vector_store %arg8[%c0_26, %c0_27], %28 {strides = array<i32>} : memref<8x128xf32, #tpu.memory_space<vmem>>, vector<8x128xf32>,
    } else {
    }
    %c0 = arith.constant 0 : index
    %c0_1 = arith.constant 0 : index
    %3 = vector.load %arg7[%c0, %c0_1] : memref<8x16xf32, #tpu.memory_space<vmem>>, vector<8x16xf32>
    %c0_2 = arith.constant 0 : index
    %c0_3 = arith.constant 0 : index
    %4 = vector.load %arg3[%c0_2, %c0_3] : memref<16x128xf32, #tpu.memory_space<vmem>>, vector<16x128xf32>
    %cst = arith.constant dense<0.000000e+00> : vector<8x128xf32>
    %5 = tpu.matmul %3, %4, %cst {dimension_numbers = #tpu.dot_dimension_numbers<[1], [0], [0], [1], [0, 0, 1, 1], [], []>} : vector<8x16xf32>, vector<16x128xf32>, vector<8x128xf32> -> vector<8x128xf32>
    %cst_4 = arith.constant 0.000000e+00 : f32
    %6 = vector.broadcast %cst_4 : f32 to vector<8x128xf32>
    %7 = arith.minimumf %5, %6 : vector<8x128xf32>
    %8 = math.exp %7 : vector<8x128xf32>
    %c0_5 = arith.constant 0 : index
    %c0_6 = arith.constant 0 : index
    %9 = vector.load %arg8[%c0_5, %c0_6] : memref<8x128xf32, #tpu.memory_space<vmem>>, vector<8x128xf32>
    %10 = arith.truncf %8 : vector<8x128xf32> to vector<8x128xbf16>
    %c0_7 = arith.constant 0 : index
    %c0_8 = arith.constant 0 : index
    %11 = vector.load %arg4[%c0_7, %c0_8] : memref<128x128xbf16, #tpu.memory_space<vmem>>, vector<128x128xbf16>
    %cst_9 = arith.constant dense<0.000000e+00> : vector<8x128xf32>
    %12 = tpu.matmul %10, %11, %cst_9 {dimension_numbers = #tpu.dot_dimension_numbers<[1], [0], [0], [1], [0, 0, 1, 1], [], []>} : vector<8x128xbf16>, vector<128x128xbf16>, vector<8x128xf32> -> vector<8x128xf32>
    %13 = arith.addf %9, %12 : vector<8x128xf32>
    %c0_10 = arith.constant 0 : index
    %c0_11 = arith.constant 0 : index
    %14 = vector.load %arg8[%c0_10, %c0_11] : memref<8x128xf32, #tpu.memory_space<vmem>>, vector<8x128xf32>
    tpu.vector_store %arg8[%c0_10, %c0_11], %13 {strides = array<i32>} : memref<8x128xf32, #tpu.memory_space<vmem>>, vector<8x128xf32>,
    %c0_i32_12 = arith.constant 0 : i32
    %15 = arith.cmpi eq, %arg1, %c0_i32_12 : i32
    %16 = arith.extui %15 : i1 to i32
    %c0_i32_13 = arith.constant 0 : i32
    %17 = arith.cmpi ne, %16, %c0_i32_13 : i32
    scf.if %17 {
      %c0_14 = arith.constant 0 : index
      %c0_15 = arith.constant 0 : index
      %18 = vector.load %arg8[%c0_14, %c0_15] : memref<8x128xf32, #tpu.memory_space<vmem>>, vector<8x128xf32>
      %c0_16 = arith.constant 0 : index
      %c0_17 = arith.constant 0 : index
      %19 = vector.load %arg5[%c0_16, %c0_17] : memref<1x128xf32, #tpu.memory_space<vmem>>, vector<1x128xf32>
      %20 = vector.broadcast %19 : vector<1x128xf32> to vector<8x128xf32>
      %21 = arith.addf %18, %20 : vector<8x128xf32>
      %c0_18 = arith.constant 0 : index
      %c0_19 = arith.constant 0 : index
      %22 = vector.load %arg6[%c0_18, %c0_19] : memref<8x128xf32, #tpu.memory_space<vmem>>, vector<8x128xf32>
      tpu.vector_store %arg6[%c0_18, %c0_19], %21 {strides = array<i32>} : memref<8x128xf32, #tpu.memory_space<vmem>>, vector<8x128xf32>,
    } else {
    }
    return
  }
  func.func @transform_0(%arg0: i32, %arg1: i32) -> (i32, i32) {
    %c0_i32 = arith.constant 0 : i32
    %c0_i32_0 = arith.constant 0 : i32
    return %arg0, %c0_i32 : i32, i32
  }
  func.func @transform_1(%arg0: i32, %arg1: i32) -> (i32, i32) {
    %c0_i32 = arith.constant 0 : i32
    %c0_i32_0 = arith.constant 0 : i32
    return %c0_i32, %arg1 : i32, i32
  }
  func.func @transform_2(%arg0: i32, %arg1: i32) -> (i32, i32) {
    %c0_i32 = arith.constant 0 : i32
    %c0_i32_0 = arith.constant 0 : i32
    return %arg1, %c0_i32 : i32, i32
  }
  func.func @transform_3(%arg0: i32, %arg1: i32) -> (i32, i32) {
    %c0_i32 = arith.constant 0 : i32
    %c0_i32_0 = arith.constant 0 : i32
    %c0_i32_1 = arith.constant 0 : i32
    return %c0_i32, %c0_i32_0 : i32, i32
  }
  func.func @transform_4(%arg0: i32, %arg1: i32) -> (i32, i32) {
    %c0_i32 = arith.constant 0 : i32
    %c0_i32_0 = arith.constant 0 : i32
    return %arg0, %c0_i32 : i32, i32
  }
}

</mosaic_0001>

<llo_original>
// kernel: tpu_custom_call.1
$region0: #{tpu_custom_call.1}
  #allocation0 [shape = 'u32[]', space=smem, size = 0x4, offset = 0x4, fixed_abs, tag = 'smem constant byte address 0x4 - core index']
  #allocation1 [shape = 'u32[144,128]{1,0:T(1,128)}', space=vmem, size = 0x12000, scoped, tag = 'internal scratch']
  #allocation2 [shape = 'f32[8,16]{1,0:T(8,128)}', space=vmem, size = 0x1000, scoped, tag = 'scratch operand']
  #allocation3 [shape = 'f32[8,128]{1,0:T(8,128)}', space=vmem, size = 0x1000, scoped, tag = 'scratch operand']
  %s0 = inlined_call_operand.hbm [shape: f32[8,8], index: 0, kind: input, shape index: {}]
  %s1 = inlined_call_operand.hbm [shape: f32[16,128], index: 1, kind: input, shape index: {}]
  %s2 = inlined_call_operand.hbm [shape: bf16[128,128], index: 2, kind: input, shape index: {}]
  %s3 = inlined_call_operand.vmem [shape: f32[1,128], index: 3, kind: input, shape index: {}]
  %s4 = inlined_call_operand.hbm [shape: f32[8,128], index: 4, kind: output, shape index: {}]
  %s5 = sld [smem:[#allocation0]]
  $region46: #{tpu_custom_call.1} parent=0
    _
  %s7 = ssub.s32 1, %s5
  %s8 = scalar_select 0, %s7, %s5
  $region1: #{tpu_custom_call.1} parent=0
    #allocation4 [shape = 'u8[4096]{0}', space=vmem, size = 0x1000, scoped, tag = 'input window, operand 0, single buffered']
    #allocation5 [shape = 's32[1]{0}', space=sflag, size = 0x4, scoped, tag = 'scoped memory for tpu_custom_call.1']
    #allocation6 [shape = 's32[1]{0}', space=sflag, size = 0x4, scoped, tag = 'scoped memory for tpu_custom_call.1']
    #allocation7 [shape = 'u8[8192]{0}', space=vmem, size = 0x2000, scoped, tag = 'input window, operand 1, single buffered']
    #allocation8 [shape = 's32[1]{0}', space=sflag, size = 0x4, scoped, tag = 'scoped memory for tpu_custom_call.1']
    #allocation9 [shape = 'u8[32768]{0}', space=vmem, size = 0x8000, scoped, tag = 'input window, operand 2, single buffered']
    #allocation10 [shape = 'u8[4096]{0}', space=vmem, size = 0x1000, scoped, tag = 'output window, operand 0, single buffered']
    %9 = vsyncpa [#allocation5], 0
    %10 = vsyncpa [#allocation8], 0
    %11 = vsyncpa [#allocation6], 0
    // Predicated region
    $region2: #{tpu_custom_call.1} parent=1 // pred_check
      _
    $region3: #{tpu_custom_call.1} parent=1 // pred_check_branch
      %13 = sbr.rel (0) target = $region5
    $region4: #{tpu_custom_call.1} parent=1 // pred_region
      %s15 = ssub.s32 128, 128
      %16 = vsyncadd [#allocation5], %s15
      %s18 = sshll.u32 [#allocation4], 4
      %s19 = int_to_ptr.vmem [resolvable:$true] %s18
      %21 = dma.hbm_to_vmem [thread:$0]  %s0, 128, %s19, [#allocation5]
    $region5: #{tpu_custom_call.1} parent=1 // pred_fallthru
      _
    // Predicated region
    $region6: #{tpu_custom_call.1} parent=1 // pred_check
      _
    $region7: #{tpu_custom_call.1} parent=1 // pred_check_branch
      %23 = sbr.rel (0) target = $region9
    $region8: #{tpu_custom_call.1} parent=1 // pred_region
      %s25 = ssub.s32 256, 256
      %26 = vsyncadd [#allocation8], %s25
      %s27 = sshll.u32 [#allocation7], 4
      %s28 = int_to_ptr.vmem [resolvable:$true] %s27
      %33 = dma.hbm_to_vmem [thread:$0]  %s1, 256, %s28, [#allocation8], 128, 128, 8
    $region9: #{tpu_custom_call.1} parent=1 // pred_fallthru
      _
    // Predicated region
    $region10: #{tpu_custom_call.1} parent=1 // pred_check
      _
    $region11: #{tpu_custom_call.1} parent=1 // pred_check_branch
      %35 = sbr.rel (0) target = $region13
    $region12: #{tpu_custom_call.1} parent=1 // pred_region
      %s37 = ssub.s32 1024, 1024
      %38 = vsyncadd [#allocation8], %s37
      %s39 = sshll.u32 [#allocation9], 4
      %s40 = int_to_ptr.vmem [resolvable:$true] %s39
      %45 = dma.hbm_to_vmem [thread:$0]  %s2, 1024, %s40, [#allocation8], 64, 64, 4
    $region13: #{tpu_custom_call.1} parent=1 // pred_fallthru
      _
    // Predicated region
    $region14: #{tpu_custom_call.1} parent=1 // pred_check
      _
    $region15: #{tpu_custom_call.1} parent=1 // pred_check_branch
      %47 = sbr.rel (0) target = $region17
    $region16: #{tpu_custom_call.1} parent=1 // pred_region
      _
    $region17: #{tpu_custom_call.1} parent=1 // pred_fallthru
      _
    // Predicated region
    $region18: #{tpu_custom_call.1} parent=1 // pred_check
      _
    $region19: #{tpu_custom_call.1} parent=1 // pred_check_branch
      %49 = sbr.rel (0) target = $region21
    $region20: #{tpu_custom_call.1} parent=1 // pred_region
      %50 = dma.done [#allocation5], 128
    $region21: #{tpu_custom_call.1} parent=1 // pred_fallthru
      _
    // Predicated region
    $region22: #{tpu_custom_call.1} parent=1 // pred_check
      _
    $region23: #{tpu_custom_call.1} parent=1 // pred_check_branch
      %52 = sbr.rel (0) target = $region25
    $region24: #{tpu_custom_call.1} parent=1 // pred_region
      %53 = dma.done [#allocation8], 256
    $region25: #{tpu_custom_call.1} parent=1 // pred_fallthru
      _
    // Predicated region
    $region26: #{tpu_custom_call.1} parent=1 // pred_check
      _
    $region27: #{tpu_custom_call.1} parent=1 // pred_check_branch
      %55 = sbr.rel (0) target = $region29
    $region28: #{tpu_custom_call.1} parent=1 // pred_region
      %56 = dma.done [#allocation8], 1024
    $region29: #{tpu_custom_call.1} parent=1 // pred_fallthru
      _
    %p58 = scmp.eq.s32.totalorder 0, 0
    // Predicated region
    $region30: #{tpu_custom_call.1} parent=1 // pred_check
      %p59 = pneg %p58
    $region31: #{tpu_custom_call.1} parent=1 // pred_check_branch
      %61 = sbr.rel (%p59) target = $region33
    $region32: #{tpu_custom_call.1} parent=1 // pred_region
      %v62 = vld [vmem:[#allocation4] sm:$0xff]
      %v63 = vmul.f32 %v62, %v62
      %vm64 = vcmask 64512
      %v65 = vsel %vm64, %v63, 0.0
      %66 = vadd.xlane.f32.xlu0 %v65
      %v67 = vpop.xlane.xlu0 %66
      %vm68 = vcmask 130048
      %69 = vst.msk [vmem:[#allocation2] sm:$0xff] %vm68, 0.0
      %70 = vst.msk [vmem:[#allocation2] sm:$0xff] %vm64, %v62
      %vm71 = vcmask 72768
      %72 = vst.msk [vmem:[#allocation2] sm:$0xff] %vm71, %v67
      %vm73 = vcmask 80968
      %74 = vst.msk [vmem:[#allocation2] sm:$0xff] %vm73, 1.0
      %75 = vst [vmem:[#allocation3] sm:$0xff] 0.0
    $region33: #{tpu_custom_call.1} parent=1 // pred_fallthru
      _
    %v76 = vld [vmem:[#allocation2] sm:$0xff]
    %v77 = vld [vmem:[#allocation7] sm:$0xff]
    %v78 = vld [vmem:[#allocation7 + $0x8] sm:$0xff]
    %vm79 = vcmask 130048
    %v81 = vsel %vm79, %v76, 0
    %83 = vmatprep.subr.mxu0 0.0
    %84 = vmatpush1.msra.mxu0 %v77
    %85 = vmatprep.subr.mxu0 0.0
    %86 = vmatpush1.msra.mxu0 %v78
    %87 = vmatprep.subr.mxu0 0.0
    %88 = vmatpush1.msra.mxu0 0.0
    %89 = vmatprep.subr.mxu0 0.0
    %90 = vmatpush1.msra.mxu0 0.0
    %91 = vmatprep.subr.mxu0 0.0
    %92 = vmatpush1.msra.mxu0 0.0
    %93 = vmatprep.subr.mxu0 0.0
    %94 = vmatpush1.msra.mxu0 0.0
    %95 = vmatprep.subr.mxu0 0.0
    %96 = vmatpush1.msra.mxu0 0.0
    %97 = vmatprep.subr.mxu0 0.0
    %98 = vmatpush1.msra.mxu0 0.0
    %99 = vmatprep.subr.mxu0 0.0
    %100 = vmatpush1.msra.mxu0 0.0
    %101 = vmatprep.subr.mxu0 0.0
    %102 = vmatpush1.msra.mxu0 0.0
    %103 = vmatprep.subr.mxu0 0.0
    %104 = vmatpush1.msra.mxu0 0.0
    %105 = vmatprep.subr.mxu0 0.0
    %106 = vmatpush1.msra.mxu0 0.0
    %107 = vmatprep.subr.mxu0 0.0
    %108 = vmatpush1.msra.mxu0 0.0
    %109 = vmatprep.subr.mxu0 0.0
    %110 = vmatpush1.msra.mxu0 0.0
    %111 = vmatprep.subr.mxu0 0.0
    %112 = vmatpush1.msra.mxu0 0.0
    %113 = vmatprep.subr.mxu0 0.0
    %114 = vmatpush1.msra.mxu0 0.0
    %115 = vmatprep.subr.mxu0 0.0
    %116 = vmatpush1.msra.mxu0 0.0
    %117 = vmatprep.subr.mxu0 0.0
    %118 = vmatpush1.msra.mxu0 0.0
    %119 = vmatprep.subr.mxu0 0.0
    %120 = vmatpush1.msra.mxu0 0.0
    %121 = vmatprep.subr.mxu0 0.0
    %122 = vmatpush1.msra.mxu0 0.0
    %123 = vmatprep.subr.mxu0 0.0
    %124 = vmatpush1.msra.mxu0 0.0
    %125 = vmatprep.subr.mxu0 0.0
    %126 = vmatpush1.msra.mxu0 0.0
    %127 = vmatprep.subr.mxu0 0.0
    %128 = vmatpush1.msra.mxu0 0.0
    %129 = vmatprep.subr.mxu0 0.0
    %130 = vmatpush1.msra.mxu0 0.0
    %131 = vmatprep.subr.mxu0 0.0
    %132 = vmatpush1.msra.mxu0 0.0
    %133 = vmatprep.subr.mxu0 0.0
    %134 = vmatpush1.msra.mxu0 0.0
    %135 = vmatprep.subr.mxu0 0.0
    %136 = vmatpush1.msra.mxu0 0.0
    %137 = vmatprep.subr.mxu0 0.0
    %138 = vmatpush1.msra.mxu0 0.0
    %139 = vmatprep.subr.mxu0 0.0
    %140 = vmatpush1.msra.mxu0 0.0
    %141 = vmatprep.subr.mxu0 0.0
    %142 = vmatpush1.msra.mxu0 0.0
    %143 = vmatprep.subr.mxu0 0.0
    %144 = vmatpush1.msra.mxu0 0.0
    %145 = vmatprep.subr.mxu0 0.0
    %146 = vmatpush1.msra.mxu0 0.0
    %147 = vmatprep.mubr.f32.mxu0 0.0
    %148 = vmatmul.mubr.f32.gmra.mrb[0].mxu0 %v81
    %v149 = vpop.f32.mrb[0].mxu0
    %v150 = vadd.f32 0.0, %v149
    %v151 = vpop.f32.mrb[0].mxu0
    %152 = vdwg.mxu0
    %v153 = vmin.f32 %v150, 0.0
    %v154 = vmul.f32 %v153, 1.442695
    %v155 = vpow.pop %v154
    %v156 = vld [vmem:[#allocation3] sm:$0xff]
    %v157 = vpack.c.bf16 %v155, %v155
    %v158 = vld [vmem:[#allocation9] sm:$0xf]
    %v159 = vld [vmem:[#allocation9 + $0x4] sm:$0xf]
    %v160 = vld [vmem:[#allocation9 + $0x8] sm:$0xf]
    %v161 = vld [vmem:[#allocation9 + $0xc] sm:$0xf]
    %v162 = vld [vmem:[#allocation9 + $0x10] sm:$0xf]
    %v163 = vld [vmem:[#allocation9 + $0x14] sm:$0xf]
    %v164 = vld [vmem:[#allocation9 + $0x18] sm:$0xf]
    %v165 = vld [vmem:[#allocation9 + $0x1c] sm:$0xf]
    %v166 = vld [vmem:[#allocation9 + $0x20] sm:$0xf]
    %v167 = vld [vmem:[#allocation9 + $0x24] sm:$0xf]
    %v168 = vld [vmem:[#allocation9 + $0x28] sm:$0xf]
    %v169 = vld [vmem:[#allocation9 + $0x2c] sm:$0xf]
    %v170 = vld [vmem:[#allocation9 + $0x30] sm:$0xf]
    %v171 = vld [vmem:[#allocation9 + $0x34] sm:$0xf]
    %v172 = vld [vmem:[#allocation9 + $0x38] sm:$0xf]
    %v173 = vld [vmem:[#allocation9 + $0x3c] sm:$0xf]
    %v190 = vunpack.c.l.b16 %v158
    %v191 = vunpack.c.l.b16 %v159
    %v192 = vunpack.c.l.b16 %v160
    %v193 = vunpack.c.l.b16 %v161
    %v194 = vunpack.c.l.b16 %v162
    %v195 = vunpack.c.l.b16 %v163
    %v196 = vunpack.c.l.b16 %v164
    %v197 = vunpack.c.l.b16 %v165
    %v198 = vunpack.c.l.b16 %v166
    %v199 = vunpack.c.l.b16 %v167
    %v200 = vunpack.c.l.b16 %v168
    %v201 = vunpack.c.l.b16 %v169
    %v202 = vunpack.c.l.b16 %v170
    %v203 = vunpack.c.l.b16 %v171
    %v204 = vunpack.c.l.b16 %v172
    %v205 = vunpack.c.l.b16 %v173
    %v206 = vpack.c.b16 %v191, %v190
    %v207 = vpack.c.b16 %v193, %v192
    %v208 = vpack.c.b16 %v195, %v194
    %v209 = vpack.c.b16 %v197, %v196
    %v210 = vpack.c.b16 %v199, %v198
    %v211 = vpack.c.b16 %v201, %v200
    %v212 = vpack.c.b16 %v203, %v202
    %v213 = vpack.c.b16 %v205, %v204
    %222 = vmatprep.subr.bf16.mxu0 0
    %223 = vmatpush1.bf16.msra.mxu0 %v206
    %224 = vmatprep.subr.bf16.mxu0 0
    %225 = vmatpush1.bf16.msra.mxu0 %v207
    %226 = vmatprep.subr.bf16.mxu0 0
    %227 = vmatpush1.bf16.msra.mxu0 %v208
    %228 = vmatprep.subr.bf16.mxu0 0
    %229 = vmatpush1.bf16.msra.mxu0 %v209
    %230 = vmatprep.subr.bf16.mxu0 0
    %231 = vmatpush1.bf16.msra.mxu0 %v210
    %232 = vmatprep.subr.bf16.mxu0 0
    %233 = vmatpush1.bf16.msra.mxu0 %v211
    %234 = vmatprep.subr.bf16.mxu0 0
    %235 = vmatpush1.bf16.msra.mxu0 %v212
    %236 = vmatprep.subr.bf16.mxu0 0
    %237 = vmatpush1.bf16.msra.mxu0 %v213
    %238 = vmatprep.subr.bf16.mxu0 0
    %239 = vmatpush1.bf16.msra.mxu0 0
    %240 = vmatprep.subr.bf16.mxu0 0
    %241 = vmatpush1.bf16.msra.mxu0 0
    %242 = vmatprep.subr.bf16.mxu0 0
    %243 = vmatpush1.bf16.msra.mxu0 0
    %244 = vmatprep.subr.bf16.mxu0 0
    %245 = vmatpush1.bf16.msra.mxu0 0
    %246 = vmatprep.subr.bf16.mxu0 0
    %247 = vmatpush1.bf16.msra.mxu0 0
    %248 = vmatprep.subr.bf16.mxu0 0
    %249 = vmatpush1.bf16.msra.mxu0 0
    %250 = vmatprep.subr.bf16.mxu0 0
    %251 = vmatpush1.bf16.msra.mxu0 0
    %252 = vmatprep.subr.bf16.mxu0 0
    %253 = vmatpush1.bf16.msra.mxu0 0
    %254 = vmatprep.mubr.bf16.mxu0 0
    %255 = vmatmul.mubr.bf16.gmra.mrb[0].mxu0 %v157
    %v256 = vpop.f32.mrb[0].mxu0
    %v257 = vadd.f32 0.0, %v256
    %v258 = vpop.f32.mrb[0].mxu0
    %v259 = vpop.f32.mrb[0].mxu0
    %v260 = vpop.f32.mrb[0].mxu0
    %261 = vdwg.mxu0
    %v262 = vadd.f32 %v156, %v257
    %263 = vst [vmem:[#allocation3] sm:$0xff] %v262
    // Predicated region
    $region34: #{tpu_custom_call.1} parent=1 // pred_check
      %p264 = pneg %p58
    $region35: #{tpu_custom_call.1} parent=1 // pred_check_branch
      %266 = sbr.rel (%p264) target = $region37
    $region36: #{tpu_custom_call.1} parent=1 // pred_region
      %v267 = vld [vmem:[#allocation3] sm:$0xff]
      %v268 = vld [vmem:[%s3] sm:$0x1]
      %v270 = vlaneseq
      %v271 = vshrl.u32 %v270, 7
      %v272 = vsub.s32 0, %v271
      %v273 = vrot.slane %v268, %v272
      %v275 = vadd.f32 %v267, %v273
      %276 = vst [vmem:[#allocation10] sm:$0xff] %v275
    $region37: #{tpu_custom_call.1} parent=1 // pred_fallthru
      _
    // Predicated region
    $region38: #{tpu_custom_call.1} parent=1 // pred_check
      _
    $region39: #{tpu_custom_call.1} parent=1 // pred_check_branch
      %278 = sbr.rel (0) target = $region41
    $region40: #{tpu_custom_call.1} parent=1 // pred_region
      %s280 = ssub.s32 128, 128
      %281 = vsyncadd [#allocation6], %s280
      %s283 = sshll.u32 [#allocation10], 4
      %s284 = int_to_ptr.vmem [resolvable:$true] %s283
      %286 = dma.vmem_to_hbm [thread:$0]  %s284, 128, %s4, [#allocation6]
    $region41: #{tpu_custom_call.1} parent=1 // pred_fallthru
      _
    // Predicated region
    $region42: #{tpu_custom_call.1} parent=1 // pred_check
      _
    $region43: #{tpu_custom_call.1} parent=1 // pred_check_branch
      %288 = sbr.rel (0) target = $region45
    $region44: #{tpu_custom_call.1} parent=1 // pred_region
      %289 = dma.done [#allocation6], 128
    $region45: #{tpu_custom_call.1} parent=1 // pred_fallthru
      _
    %290 = vsyncpa [#allocation5], 1
    %291 = vsyncpa [#allocation8], 1
    %292 = vsyncpa [#allocation6], 1

// kernel: tpu_custom_call.1
$region0: #{tpu_custom_call.1}
  #allocation0 [shape = 'u32[]', space=smem, size = 0x4, offset = 0x4, fixed_abs, tag = 'smem constant byte address 0x4 - core index']
  #allocation1 [shape = 'u32[144,128]{1,0:T(1,128)}', space=vmem, size = 0x12000, scoped, tag = 'internal scratch']
  #allocation2 [shape = 'f32[8,16]{1,0:T(8,128)}', space=vmem, size = 0x1000, scoped, tag = 'scratch operand']
  #allocation3 [shape = 'f32[8,128]{1,0:T(8,128)}', space=vmem, size = 0x1000, scoped, tag = 'scratch operand']
  %s0 = inlined_call_operand.hbm [shape: f32[8,8], index: 0, kind: input, shape index: {}]
  %s1 = inlined_call_operand.hbm [shape: f32[16,128], index: 1, kind: input, shape index: {}]
  %s2 = inlined_call_operand.hbm [shape: bf16[128,128], index: 2, kind: input, shape index: {}]
  %s3 = inlined_call_operand.vmem [shape: f32[1,128], index: 3, kind: input, shape index: {}]
  %s4 = inlined_call_operand.hbm [shape: f32[8,128], index: 4, kind: output, shape index: {}]
  %s5 = sld [smem:[#allocation0]]
  $region46: #{tpu_custom_call.1} parent=0
    _
  %s7 = ssub.s32 1, %s5
  %s8 = scalar_select 0, %s7, %s5
  $region1: #{tpu_custom_call.1} parent=0
    #allocation4 [shape = 'u8[4096]{0}', space=vmem, size = 0x1000, scoped, tag = 'input window, operand 0, single buffered']
    #allocation5 [shape = 's32[1]{0}', space=sflag, size = 0x4, scoped, tag = 'scoped memory for tpu_custom_call.1']
    #allocation6 [shape = 's32[1]{0}', space=sflag, size = 0x4, scoped, tag = 'scoped memory for tpu_custom_call.1']
    #allocation7 [shape = 'u8[8192]{0}', space=vmem, size = 0x2000, scoped, tag = 'input window, operand 1, single buffered']
    #allocation8 [shape = 's32[1]{0}', space=sflag, size = 0x4, scoped, tag = 'scoped memory for tpu_custom_call.1']
    #allocation9 [shape = 'u8[32768]{0}', space=vmem, size = 0x8000, scoped, tag = 'input window, operand 2, single buffered']
    #allocation10 [shape = 'u8[4096]{0}', space=vmem, size = 0x1000, scoped, tag = 'output window, operand 0, single buffered']
    %9 = vsyncpa [#allocation5], 0
    %10 = vsyncpa [#allocation8], 0
    %11 = vsyncpa [#allocation6], 0
    // Predicated region
    $region2: #{tpu_custom_call.1} parent=1 // pred_check
      _
    $region3: #{tpu_custom_call.1} parent=1 // pred_check_branch
      %13 = sbr.rel (0) target = $region5
    $region4: #{tpu_custom_call.1} parent=1 // pred_region
      %s15 = ssub.s32 128, 128
      %16 = vsyncadd [#allocation5], %s15
      %s18 = sshll.u32 [#allocation4], 4
      %s19 = int_to_ptr.vmem [resolvable:$true] %s18
      %21 = dma.hbm_to_vmem [thread:$0]  %s0, 128, %s19, [#allocation5]
    $region5: #{tpu_custom_call.1} parent=1 // pred_fallthru
      _
    // Predicated region
    $region6: #{tpu_custom_call.1} parent=1 // pred_check
      _
    $region7: #{tpu_custom_call.1} parent=1 // pred_check_branch
      %23 = sbr.rel (0) target = $region9
    $region8: #{tpu_custom_call.1} parent=1 // pred_region
      %s25 = ssub.s32 256, 256
      %26 = vsyncadd [#allocation8], %s25
      %s27 = sshll.u32 [#allocation7], 4
      %s28 = int_to_ptr.vmem [resolvable:$true] %s27
      %33 = dma.hbm_to_vmem [thread:$0]  %s1, 256, %s28, [#allocation8], 128, 128, 8
    $region9: #{tpu_custom_call.1} parent=1 // pred_fallthru
      _
    // Predicated region
    $region10: #{tpu_custom_call.1} parent=1 // pred_check
      _
    $region11: #{tpu_custom_call.1} parent=1 // pred_check_branch
      %35 = sbr.rel (0) target = $region13
    $region12: #{tpu_custom_call.1} parent=1 // pred_region
      %s37 = ssub.s32 1024, 1024
      %38 = vsyncadd [#allocation8], %s37
      %s39 = sshll.u32 [#allocation9], 4
      %s40 = int_to_ptr.vmem [resolvable:$true] %s39
      %45 = dma.hbm_to_vmem [thread:$0]  %s2, 1024, %s40, [#allocation8], 64, 64, 4
    $region13: #{tpu_custom_call.1} parent=1 // pred_fallthru
      _
    // Predicated region
    $region14: #{tpu_custom_call.1} parent=1 // pred_check
      _
    $region15: #{tpu_custom_call.1} parent=1 // pred_check_branch
      %47 = sbr.rel (0) target = $region17
    $region16: #{tpu_custom_call.1} parent=1 // pred_region
      _
    $region17: #{tpu_custom_call.1} parent=1 // pred_fallthru
      _
    // Predicated region
    $region18: #{tpu_custom_call.1} parent=1 // pred_check
      _
    $region19: #{tpu_custom_call.1} parent=1 // pred_check_branch
      %49 = sbr.rel (0) target = $region21
    $region20: #{tpu_custom_call.1} parent=1 // pred_region
      %50 = dma.done [#allocation5], 128
    $region21: #{tpu_custom_call.1} parent=1 // pred_fallthru
      _
    // Predicated region
    $region22: #{tpu_custom_call.1} parent=1 // pred_check
      _
    $region23: #{tpu_custom_call.1} parent=1 // pred_check_branch
      %52 = sbr.rel (0) target = $region25
    $region24: #{tpu_custom_call.1} parent=1 // pred_region
      %53 = dma.done [#allocation8], 256
    $region25: #{tpu_custom_call.1} parent=1 // pred_fallthru
      _
    // Predicated region
    $region26: #{tpu_custom_call.1} parent=1 // pred_check
      _
    $region27: #{tpu_custom_call.1} parent=1 // pred_check_branch
      %55 = sbr.rel (0) target = $region29
    $region28: #{tpu_custom_call.1} parent=1 // pred_region
      %56 = dma.done [#allocation8], 1024
    $region29: #{tpu_custom_call.1} parent=1 // pred_fallthru
      _
    %p58 = scmp.eq.s32.totalorder 0, 0
    // Predicated region
    $region30: #{tpu_custom_call.1} parent=1 // pred_check
      %p59 = pneg %p58
    $region31: #{tpu_custom_call.1} parent=1 // pred_check_branch
      %61 = sbr.rel (%p59) target = $region33
    $region32: #{tpu_custom_call.1} parent=1 // pred_region
      %v62 = vld [vmem:[#allocation4] sm:$0xff]
      %v63 = vmul.f32 %v62, %v62
      %vm64 = vcmask 64512
      %v65 = vsel %vm64, %v63, 0.0
      %66 = vadd.xlane.f32.xlu0 %v65
      %v67 = vpop.xlane.xlu0 %66
      %vm68 = vcmask 130048
      %69 = vst.msk [vmem:[#allocation2] sm:$0xff] %vm68, 0.0
      %70 = vst.msk [vmem:[#allocation2] sm:$0xff] %vm64, %v62
      %vm71 = vcmask 72768
      %72 = vst.msk [vmem:[#allocation2] sm:$0xff] %vm71, %v67
      %vm73 = vcmask 80968
      %74 = vst.msk [vmem:[#allocation2] sm:$0xff] %vm73, 1.0
      %75 = vst [vmem:[#allocation3] sm:$0xff] 0.0
    $region33: #{tpu_custom_call.1} parent=1 // pred_fallthru
      _
    %v76 = vld [vmem:[#allocation2] sm:$0xff]
    %v77 = vld [vmem:[#allocation7] sm:$0xff]
    %v78 = vld [vmem:[#allocation7 + $0x8] sm:$0xff]
    %vm79 = vcmask 130048
    %v81 = vsel %vm79, %v76, 0
    %83 = vmatprep.subr.mxu0 0.0
    %84 = vmatpush1.msra.mxu0 %v77
    %85 = vmatprep.subr.mxu0 0.0
    %86 = vmatpush1.msra.mxu0 %v78
    %87 = vmatprep.subr.mxu0 0.0
    %88 = vmatpush1.msra.mxu0 0.0
    %89 = vmatprep.subr.mxu0 0.0
    %90 = vmatpush1.msra.mxu0 0.0
    %91 = vmatprep.subr.mxu0 0.0
    %92 = vmatpush1.msra.mxu0 0.0
    %93 = vmatprep.subr.mxu0 0.0
    %94 = vmatpush1.msra.mxu0 0.0
    %95 = vmatprep.subr.mxu0 0.0
    %96 = vmatpush1.msra.mxu0 0.0
    %97 = vmatprep.subr.mxu0 0.0
    %98 = vmatpush1.msra.mxu0 0.0
    %99 = vmatprep.subr.mxu0 0.0
    %100 = vmatpush1.msra.mxu0 0.0
    %101 = vmatprep.subr.mxu0 0.0
    %102 = vmatpush1.msra.mxu0 0.0
    %103 = vmatprep.subr.mxu0 0.0
    %104 = vmatpush1.msra.mxu0 0.0
    %105 = vmatprep.subr.mxu0 0.0
    %106 = vmatpush1.msra.mxu0 0.0
    %107 = vmatprep.subr.mxu0 0.0
    %108 = vmatpush1.msra.mxu0 0.0
    %109 = vmatprep.subr.mxu0 0.0
    %110 = vmatpush1.msra.mxu0 0.0
    %111 = vmatprep.subr.mxu0 0.0
    %112 = vmatpush1.msra.mxu0 0.0
    %113 = vmatprep.subr.mxu0 0.0
    %114 = vmatpush1.msra.mxu0 0.0
    %115 = vmatprep.subr.mxu0 0.0
    %116 = vmatpush1.msra.mxu0 0.0
    %117 = vmatprep.subr.mxu0 0.0
    %118 = vmatpush1.msra.mxu0 0.0
    %119 = vmatprep.subr.mxu0 0.0
    %120 = vmatpush1.msra.mxu0 0.0
    %121 = vmatprep.subr.mxu0 0.0
    %122 = vmatpush1.msra.mxu0 0.0
    %123 = vmatprep.subr.mxu0 0.0
    %124 = vmatpush1.msra.mxu0 0.0
    %125 = vmatprep.subr.mxu0 0.0
    %126 = vmatpush1.msra.mxu0 0.0
    %127 = vmatprep.subr.mxu0 0.0
    %128 = vmatpush1.msra.mxu0 0.0
    %129 = vmatprep.subr.mxu0 0.0
    %130 = vmatpush1.msra.mxu0 0.0
    %131 = vmatprep.subr.mxu0 0.0
    %132 = vmatpush1.msra.mxu0 0.0
    %133 = vmatprep.subr.mxu0 0.0
    %134 = vmatpush1.msra.mxu0 0.0
    %135 = vmatprep.subr.mxu0 0.0
    %136 = vmatpush1.msra.mxu0 0.0
    %137 = vmatprep.subr.mxu0 0.0
    %138 = vmatpush1.msra.mxu0 0.0
    %139 = vmatprep.subr.mxu0 0.0
    %140 = vmatpush1.msra.mxu0 0.0
    %141 = vmatprep.subr.mxu0 0.0
    %142 = vmatpush1.msra.mxu0 0.0
    %143 = vmatprep.subr.mxu0 0.0
    %144 = vmatpush1.msra.mxu0 0.0
    %145 = vmatprep.subr.mxu0 0.0
    %146 = vmatpush1.msra.mxu0 0.0
    %147 = vmatprep.mubr.f32.mxu0 0.0
    %148 = vmatmul.mubr.f32.gmra.mrb[0].mxu0 %v81
    %v149 = vpop.f32.mrb[0].mxu0
    %v150 = vadd.f32 0.0, %v149
    %v151 = vpop.f32.mrb[0].mxu0
    %152 = vdwg.mxu0
    %v153 = vmin.f32 %v150, 0.0
    %v154 = vmul.f32 %v153, 1.442695
    %v155 = vpow.pop %v154
    %v156 = vld [vmem:[#allocation3] sm:$0xff]
    %v157 = vpack.c.bf16 %v155, %v155
    %v158 = vld [vmem:[#allocation9] sm:$0xf]
    %v159 = vld [vmem:[#allocation9 + $0x4] sm:$0xf]
    %v160 = vld [vmem:[#allocation9 + $0x8] sm:$0xf]
    %v161 = vld [vmem:[#allocation9 + $0xc] sm:$0xf]
    %v162 = vld [vmem:[#allocation9 + $0x10] sm:$0xf]
    %v163 = vld [vmem:[#allocation9 + $0x14] sm:$0xf]
    %v164 = vld [vmem:[#allocation9 + $0x18] sm:$0xf]
    %v165 = vld [vmem:[#allocation9 + $0x1c] sm:$0xf]
    %v166 = vld [vmem:[#allocation9 + $0x20] sm:$0xf]
    %v167 = vld [vmem:[#allocation9 + $0x24] sm:$0xf]
    %v168 = vld [vmem:[#allocation9 + $0x28] sm:$0xf]
    %v169 = vld [vmem:[#allocation9 + $0x2c] sm:$0xf]
    %v170 = vld [vmem:[#allocation9 + $0x30] sm:$0xf]
    %v171 = vld [vmem:[#allocation9 + $0x34] sm:$0xf]
    %v172 = vld [vmem:[#allocation9 + $0x38] sm:$0xf]
    %v173 = vld [vmem:[#allocation9 + $0x3c] sm:$0xf]
    %v190 = vunpack.c.l.b16 %v158
    %v191 = vunpack.c.l.b16 %v159
    %v192 = vunpack.c.l.b16 %v160
    %v193 = vunpack.c.l.b16 %v161
    %v194 = vunpack.c.l.b16 %v162
    %v195 = vunpack.c.l.b16 %v163
    %v196 = vunpack.c.l.b16 %v164
    %v197 = vunpack.c.l.b16 %v165
    %v198 = vunpack.c.l.b16 %v166
    %v199 = vunpack.c.l.b16 %v167
    %v200 = vunpack.c.l.b16 %v168
    %v201 = vunpack.c.l.b16 %v169
    %v202 = vunpack.c.l.b16 %v170
    %v203 = vunpack.c.l.b16 %v171
    %v204 = vunpack.c.l.b16 %v172
    %v205 = vunpack.c.l.b16 %v173
    %v206 = vpack.c.b16 %v191, %v190
    %v207 = vpack.c.b16 %v193, %v192
    %v208 = vpack.c.b16 %v195, %v194
    %v209 = vpack.c.b16 %v197, %v196
    %v210 = vpack.c.b16 %v199, %v198
    %v211 = vpack.c.b16 %v201, %v200
    %v212 = vpack.c.b16 %v203, %v202
    %v213 = vpack.c.b16 %v205, %v204
    %222 = vmatprep.subr.bf16.mxu0 0
    %223 = vmatpush1.bf16.msra.mxu0 %v206
    %224 = vmatprep.subr.bf16.mxu0 0
    %225 = vmatpush1.bf16.msra.mxu0 %v207
    %226 = vmatprep.subr.bf16.mxu0 0
    %227 = vmatpush1.bf16.msra.mxu0 %v208
    %228 = vmatprep.subr.bf16.mxu0 0
    %229 = vmatpush1.bf16.msra.mxu0 %v209
    %230 = vmatprep.subr.bf16.mxu0 0
    %231 = vmatpush1.bf16.msra.mxu0 %v210
    %232 = vmatprep.subr.bf16.mxu0 0
    %233 = vmatpush1.bf16.msra.mxu0 %v211
    %234 = vmatprep.subr.bf16.mxu0 0
    %235 = vmatpush1.bf16.msra.mxu0 %v212
    %236 = vmatprep.subr.bf16.mxu0 0
    %237 = vmatpush1.bf16.msra.mxu0 %v213
    %238 = vmatprep.subr.bf16.mxu0 0
    %239 = vmatpush1.bf16.msra.mxu0 0
    %240 = vmatprep.subr.bf16.mxu0 0
    %241 = vmatpush1.bf16.msra.mxu0 0
    %242 = vmatprep.subr.bf16.mxu0 0
    %243 = vmatpush1.bf16.msra.mxu0 0
    %244 = vmatprep.subr.bf16.mxu0 0
    %245 = vmatpush1.bf16.msra.mxu0 0
    %246 = vmatprep.subr.bf16.mxu0 0
    %247 = vmatpush1.bf16.msra.mxu0 0
    %248 = vmatprep.subr.bf16.mxu0 0
    %249 = vmatpush1.bf16.msra.mxu0 0
    %250 = vmatprep.subr.bf16.mxu0 0
    %251 = vmatpush1.bf16.msra.mxu0 0
    %252 = vmatprep.subr.bf16.mxu0 0
    %253 = vmatpush1.bf16.msra.mxu0 0
    %254 = vmatprep.mubr.bf16.mxu0 0
    %255 = vmatmul.mubr.bf16.gmra.mrb[0].mxu0 %v157
    %v256 = vpop.f32.mrb[0].mxu0
    %v257 = vadd.f32 0.0, %v256
    %v258 = vpop.f32.mrb[0].mxu0
    %v259 = vpop.f32.mrb[0].mxu0
    %v260 = vpop.f32.mrb[0].mxu0
    %261 = vdwg.mxu0
    %v262 = vadd.f32 %v156, %v257
    %263 = vst [vmem:[#allocation3] sm:$0xff] %v262
    // Predicated region
    $region34: #{tpu_custom_call.1} parent=1 // pred_check
      %p264 = pneg %p58
    $region35: #{tpu_custom_call.1} parent=1 // pred_check_branch
      %266 = sbr.rel (%p264) target = $region37
    $region36: #{tpu_custom_call.1} parent=1 // pred_region
      %v267 = vld [vmem:[#allocation3] sm:$0xff]
      %v268 = vld [vmem:[%s3] sm:$0x1]
      %v270 = vlaneseq
      %v271 = vshrl.u32 %v270, 7
      %v272 = vsub.s32 0, %v271
      %v273 = vrot.slane %v268, %v272
      %v275 = vadd.f32 %v267, %v273
      %276 = vst [vmem:[#allocation10] sm:$0xff] %v275
    $region37: #{tpu_custom_call.1} parent=1 // pred_fallthru
      _
    // Predicated region
    $region38: #{tpu_custom_call.1} parent=1 // pred_check
      _
    $region39: #{tpu_custom_call.1} parent=1 // pred_check_branch
      %278 = sbr.rel (0) target = $region41
    $region40: #{tpu_custom_call.1} parent=1 // pred_region
      %s280 = ssub.s32 128, 128
      %281 = vsyncadd [#allocation6], %s280
      %s283 = sshll.u32 [#allocation10], 4
      %s284 = int_to_ptr.vmem [resolvable:$true] %s283
      %286 = dma.vmem_to_hbm [thread:$0]  %s284, 128, %s4, [#allocation6]
    $region41: #{tpu_custom_call.1} parent=1 // pred_fallthru
      _
    // Predicated region
    $region42: #{tpu_custom_call.1} parent=1 // pred_check
      _
    $region43: #{tpu_custom_call.1} parent=1 // pred_check_branch
      %288 = sbr.rel (0) target = $region45
    $region44: #{tpu_custom_call.1} parent=1 // pred_region
      %289 = dma.done [#allocation6], 128
    $region45: #{tpu_custom_call.1} parent=1 // pred_fallthru
      _
    %290 = vsyncpa [#allocation5], 1
    %291 = vsyncpa [#allocation8], 1
    %292 = vsyncpa [#allocation6], 1

</llo_original>
